<compile_context>
chip_gen: v6e
topology: v6e:2x2x1
jax: 0.10.0
libtpu: 0.0.40
codegen_flags: <defaults>
</compile_context>

<pallas_src>
import functools

import jax
import jax.numpy as jnp
from jax.experimental import pallas as pl
from jax.experimental.pallas import tpu as pltpu


def _round_up(x, m):
    return ((x + m - 1) // m) * m


def _vmem_capacity_bytes():
    try:
        return int(pltpu.get_tpu_info().vmem_capacity_bytes)
    except Exception:
        return 64 * 1024 * 1024  # conservative (v7x-sized) fallback


def _linrelu_kernel_single(x_ref, w_ref, b_ref, o_ref, *, compute_dtype):
    """K collapsed into the tile: y = relu(x @ w + b) straight to o_ref.

    x_ref: (tm, Kp)   activations tile (whole reduction dim resident)
    w_ref: (Kp, tn)   weight tile, already (in, out) layout -> canonical RHS
    b_ref: (1, tn)    bias tile
    o_ref: (tm, tn)   output tile
    """
    x = x_ref[...]
    w = w_ref[...]
    if compute_dtype is not None:   # accuracy-reviewed opt-in (e.g. bf16 MXU)
        x = x.astype(compute_dtype)
        w = w.astype(compute_dtype)
    y = jnp.dot(x, w, preferred_element_type=jnp.float32) + b_ref[...]
    o_ref[...] = jnp.maximum(y, 0.0).astype(o_ref.dtype)


def _linrelu_kernel_kloop(x_ref, w_ref, b_ref, o_ref, acc_ref, *, compute_dtype):
    """K is the innermost ('arbitrary') grid axis; acc_ref persists across k."""
    k = pl.program_id(2)

    @pl.when(k == 0)
    def _():
        acc_ref[...] = jnp.zeros_like(acc_ref)

    x = x_ref[...]
    w = w_ref[...]
    if compute_dtype is not None:
        x = x.astype(compute_dtype)
        w = w.astype(compute_dtype)
    acc_ref[...] += jnp.dot(x, w, preferred_element_type=jnp.float32)

    @pl.when(k == pl.num_programs(2) - 1)
    def _():
        y = acc_ref[...] + b_ref[...]          # bias added exactly once, in f32
        o_ref[...] = jnp.maximum(y, 0.0).astype(o_ref.dtype)


def lin_relu(x, weight, bias, *, tm=None, tn=None, tk=None,
             compute_dtype=None, weight_buffers=2, force_pallas=False):
    """y = relu(x @ weight.T + bias).

    x: (B, in_size); weight: (out_size, in_size) [PyTorch layout]; bias: (out_size,).
    """
    B, in_size = x.shape
    out_size, in_size_w = weight.shape
    assert in_size == in_size_w, "weight/in_size mismatch"
    assert bias.shape == (out_size,)

    # Tiny-layer dispatch: a Pallas call cannot beat fused XLA dot+relu when
    # the MXU would be nearly idle and per-step overhead dominates.
    if not force_pallas and (B * out_size < 128 * 128 or in_size < 128):
        return jnp.maximum(x @ weight.T + bias, 0.0)

    # One-time transpose to the canonical MXU RHS layout (in, out).  In a real
    # model cache this at parameter-load time so it never touches the hot path.
    w_t = weight.T

    itm = jnp.dtype(x.dtype).itemsize
    sub = {4: 8, 2: 16, 1: 32}.get(itm, 8)        # sublane packing per dtype

    # Per-generation VMEM budget: ~96 MiB on v5e/v6e (128 MiB), ~48 MiB on v7x.
    budget = (_vmem_capacity_bytes() * 3) // 4

    user_tm, user_tn = tm is not None, tn is not None
    if tm is None:
        tm = min(512, _round_up(B, sub))
    if tn is None:
        tn = min(1024, _round_up(out_size, 128))

    def _need(tm_, tn_, tk_):
        kloop = pl.cdiv(in_size, tk_) > 1
        f = 2 * tm_ * tk_ * itm                   # x tile, double-buffered
        f += weight_buffers * tk_ * tn_ * itm     # weight tile
        f += 2 * tn_ * itm                        # bias tile
        f += 2 * tm_ * tn_ * itm                  # output tile
        if kloop:
            f += tm_ * tn_ * 4                    # f32 accumulator scratch
        return f

    Kp_full = _round_up(in_size, 128)
    if tk is None:
        # K-collapse whenever the whole reduction fits the VMEM budget: kills
        # the accumulator RMW per K step and every init/finalize branch.
        tk = Kp_full if _need(tm, tn, Kp_full) <= budget else min(1024, Kp_full)

    # Megacore guard (v7x has 2 TensorCores): keep >= 2 parallel output blocks.
    def _n_parallel(tm_, tn_):
        return (_round_up(B, tm_) // tm_) * (_round_up(out_size, tn_) // tn_)

    if _n_parallel(tm, tn) < 2:
        if not user_tn and out_size > 128:
            tn = max(128, _round_up(pl.cdiv(out_size, 2), 128))
        elif not user_tm and B > sub:
            tm = max(sub, _round_up(pl.cdiv(B, 2), sub))

    # Shrink the plan until it fits the per-generation budget (rarely needed
    # at the defaults; protects bf16/large-K plans and user overrides).
    while _need(tm, tn, tk) > budget:
        if tk > 512:
            tk = max(128, ((tk // 2) // 128) * 128)
        elif tn > 256:
            tn = max(128, ((tn // 2) // 128) * 128)
        elif tm > 2 * sub:
            tm = max(sub, ((tm // 2) // sub) * sub)
        elif tk > 128:
            tk = max(128, ((tk // 2) // 128) * 128)
        else:
            break

    assert tn % 128 == 0 and tk % 128 == 0, "tn and tk must be multiples of 128"
    assert tm % sub == 0, f"tm must be a multiple of {sub} for dtype {x.dtype}"

    Mp = _round_up(B, tm)
    Np = _round_up(out_size, tn)
    Kp = _round_up(in_size, tk)

    # Zero-pad once so every tile is full and lane-dense (padded K contributes
    # 0 to the contraction; padded M/N rows/cols are sliced off at the end).
    x_p = x if (Mp == B and Kp == in_size) else jnp.pad(
        x, ((0, Mp - B), (0, Kp - in_size)))
    w_p = w_t if (Kp == in_size and Np == out_size) else jnp.pad(
        w_t, ((0, Kp - in_size), (0, Np - out_size)))
    b_p = bias if Np == out_size else jnp.pad(bias, (0, Np - out_size))
    b2 = b_p.reshape(1, Np)

    gm, gn, gk = Mp // tm, Np // tn, Kp // tk

    vmem_limit = int(budget)

    cost = pl.CostEstimate(
        flops=2 * Mp * Np * Kp,
        transcendentals=0,
        bytes_accessed=int(x_p.size * itm * gn                       # x re-read per N block
                           + w_p.size * w_p.dtype.itemsize * gm      # W re-read per M block
                           + b2.size * b2.dtype.itemsize * gm
                           + Mp * Np * itm),
    )

    w_spec_extra = {}
    if weight_buffers != 2:
        # Deeper weight buffering: only enable if profiling shows exposed DMA
        # on the weight stream and VMEM headroom remains (check on v7x).
        w_spec_extra["pipeline_mode"] = pl.Buffered(weight_buffers)

    if gk == 1:
        # No-accumulator fast path: whole K resident, 2-D parallel grid.
        kernel = functools.partial(_linrelu_kernel_single,
                                   compute_dtype=compute_dtype)
        grid_spec = pltpu.PrefetchScalarGridSpec(
            num_scalar_prefetch=0,
            grid=(gm, gn),
            in_specs=[
                pl.BlockSpec((tm, Kp), lambda i, j: (i, 0)),               # x
                pl.BlockSpec((Kp, tn), lambda i, j: (0, j), **w_spec_extra),  # W^T
                pl.BlockSpec((1, tn), lambda i, j: (0, j)),                # bias
            ],
            out_specs=pl.BlockSpec((tm, tn), lambda i, j: (i, j)),
        )
        dim_sem = ("parallel", "parallel")
    else:
        kernel = functools.partial(_linrelu_kernel_kloop,
                                   compute_dtype=compute_dtype)
        grid_spec = pltpu.PrefetchScalarGridSpec(
            num_scalar_prefetch=0,
            grid=(gm, gn, gk),
            in_specs=[
                pl.BlockSpec((tm, tk), lambda i, j, k: (i, k)),               # x
                pl.BlockSpec((tk, tn), lambda i, j, k: (k, j), **w_spec_extra),  # W^T
                pl.BlockSpec((1, tn), lambda i, j, k: (0, j)),                # bias
            ],
            out_specs=pl.BlockSpec((tm, tn), lambda i, j, k: (i, j)),
            scratch_shapes=[pltpu.VMEM((tm, tn), jnp.float32)],
        )
        dim_sem = ("parallel", "parallel", "arbitrary")

    out_padded = pl.pallas_call(
        kernel,
        out_shape=jax.ShapeDtypeStruct((Mp, Np), x.dtype),
        grid_spec=grid_spec,
        compiler_params=pltpu.CompilerParams(
            dimension_semantics=dim_sem,
            vmem_limit_bytes=vmem_limit,
        ),
        cost_estimate=cost,
    )(x_p, w_p, b2)

    if Mp == B and Np == out_size:
        return out_padded
    return out_padded[:B, :out_size]


if __name__ == "__main__":
    key = jax.random.PRNGKey(0)
    kx, kw, kb, kx2, kw2, kb2 = jax.random.split(key, 6)

    # ---- Test 1: module-sized shapes, exercises the K-collapsed fast path ---
    batch, in_size, out_size = 8, 32, 64
    # Deterministic init mimicking nn.Linear.reset_parameters():
    # U(-1/sqrt(in_size), 1/sqrt(in_size)) for both weight and bias.
    bound = 1.0 / jnp.sqrt(jnp.float32(in_size))
    weight = jax.random.uniform(
        kw, (out_size, in_size), jnp.float32, minval=-bound, maxval=bound)
    bias = jax.random.uniform(
        kb, (out_size,), jnp.float32, minval=-bound, maxval=bound)
    x = jax.random.normal(kx, (batch, in_size), jnp.float32)

    out = lin_relu(x, weight, bias, force_pallas=True)
    out = jax.block_until_ready(out)
    ref = jnp.maximum(x @ weight.T + bias, 0.0)
    assert out.shape == (batch, out_size)
    assert jnp.allclose(out, ref, atol=1e-5, rtol=1e-5)

    # ---- Test 2: force the K-loop / accumulator path (tk < Kp) -------------
    b2_, in2, out2 = 16, 256, 128
    bnd2 = 1.0 / jnp.sqrt(jnp.float32(in2))
    weight2 = jax.random.uniform(
        kw2, (out2, in2), jnp.float32, minval=-bnd2, maxval=bnd2)
    bias2 = jax.random.uniform(kb2, (out2,), jnp.float32, minval=-bnd2, maxval=bnd2)
    x2 = jax.random.normal(kx2, (b2_, in2), jnp.float32)

    out2_v = lin_relu(x2, weight2, bias2, tk=128, force_pallas=True)
    out2_v = jax.block_until_ready(out2_v)
    ref2 = jnp.maximum(x2 @ weight2.T + bias2, 0.0)
    assert out2_v.shape == (b2_, out2)
    assert jnp.allclose(out2_v, ref2, atol=1e-4, rtol=1e-4)

    print("KERNEL_OK")
</pallas_src>

<mosaic_0001>
module attributes {stable_mosaic.version = 11 : i64} {
  func.func @_linrelu_kernel_single(%arg0: i32, %arg1: i32, %arg2: memref<8x128xf32, #tpu.memory_space<vmem>>, %arg3: memref<128x128xf32, #tpu.memory_space<vmem>>, %arg4: memref<1x128xf32, #tpu.memory_space<vmem>>, %arg5: memref<8x128xf32, #tpu.memory_space<vmem>>) attributes {dimension_semantics = [#tpu.dimension_semantics<parallel>, #tpu.dimension_semantics<parallel>], iteration_bounds = array<i64: 1, 1>, scalar_prefetch = 0 : i64, scratch_operands = 0 : i64, tpu.core_type = #tpu.core_type<tc>, window_params = [{transform_indices = @transform_0, window_bounds = array<i64: 8, 128>}, {transform_indices = @transform_1, window_bounds = array<i64: 128, 128>}, {transform_indices = @transform_2, window_bounds = array<i64: 1, 128>}, {transform_indices = @transform_3, window_bounds = array<i64: 8, 128>}]} {
    %c0 = arith.constant 0 : index
    %c0_0 = arith.constant 0 : index
    %0 = vector.load %arg2[%c0, %c0_0] : memref<8x128xf32, #tpu.memory_space<vmem>>, vector<8x128xf32>
    %c0_1 = arith.constant 0 : index
    %c0_2 = arith.constant 0 : index
    %1 = vector.load %arg3[%c0_1, %c0_2] : memref<128x128xf32, #tpu.memory_space<vmem>>, vector<128x128xf32>
    %cst = arith.constant dense<0.000000e+00> : vector<8x128xf32>
    %2 = tpu.matmul %0, %1, %cst {dimension_numbers = #tpu.dot_dimension_numbers<[1], [0], [0], [1], [0, 0, 1, 1], [], []>} : vector<8x128xf32>, vector<128x128xf32>, vector<8x128xf32> -> vector<8x128xf32>
    %c0_3 = arith.constant 0 : index
    %c0_4 = arith.constant 0 : index
    %3 = vector.load %arg4[%c0_3, %c0_4] : memref<1x128xf32, #tpu.memory_space<vmem>>, vector<1x128xf32>
    %4 = vector.broadcast %3 : vector<1x128xf32> to vector<8x128xf32>
    %5 = arith.addf %2, %4 : vector<8x128xf32>
    %cst_5 = arith.constant 0.000000e+00 : f32
    %6 = vector.broadcast %cst_5 : f32 to vector<8x128xf32>
    %7 = arith.maximumf %5, %6 : vector<8x128xf32>
    %c0_6 = arith.constant 0 : index
    %c0_7 = arith.constant 0 : index
    %8 = vector.load %arg5[%c0_6, %c0_7] : memref<8x128xf32, #tpu.memory_space<vmem>>, vector<8x128xf32>
    tpu.vector_store %arg5[%c0_6, %c0_7], %7 {strides = array<i32>} : memref<8x128xf32, #tpu.memory_space<vmem>>, vector<8x128xf32>,
    return
  }
  func.func @transform_0(%arg0: i32, %arg1: i32) -> (i32, i32) {
    %c0_i32 = arith.constant 0 : i32
    %c0_i32_0 = arith.constant 0 : i32
    return %arg0, %c0_i32 : i32, i32
  }
  func.func @transform_1(%arg0: i32, %arg1: i32) -> (i32, i32) {
    %c0_i32 = arith.constant 0 : i32
    %c0_i32_0 = arith.constant 0 : i32
    return %c0_i32, %arg1 : i32, i32
  }
  func.func @transform_2(%arg0: i32, %arg1: i32) -> (i32, i32) {
    %c0_i32 = arith.constant 0 : i32
    %c0_i32_0 = arith.constant 0 : i32
    return %c0_i32, %arg1 : i32, i32
  }
  func.func @transform_3(%arg0: i32, %arg1: i32) -> (i32, i32) {
    %c0_i32 = arith.constant 0 : i32
    return %arg0, %arg1 : i32, i32
  }
}

</mosaic_0001>

<llo_original>
// kernel: tpu_custom_call.1
$region0: #{tpu_custom_call.1}
  #allocation0 [shape = 'u32[]', space=smem, size = 0x4, offset = 0x4, fixed_abs, tag = 'smem constant byte address 0x4 - core index']
  #allocation1 [shape = 'u32[144,128]{1,0:T(1,128)}', space=vmem, size = 0x12000, scoped, tag = 'internal scratch']
  %s0 = inlined_call_operand.hbm [shape: f32[8,128], index: 0, kind: input, shape index: {}]
  %s1 = inlined_call_operand.hbm [shape: f32[128,128], index: 1, kind: input, shape index: {}]
  %s2 = inlined_call_operand.vmem [shape: f32[1,128], index: 2, kind: input, shape index: {}]
  %s3 = inlined_call_operand.hbm [shape: f32[8,128], index: 3, kind: output, shape index: {}]
  %s4 = sld [smem:[#allocation0]]
  $region30: #{tpu_custom_call.1} parent=0
    _
  %s6 = ssub.s32 1, %s4
  %s7 = scalar_select 0, %s6, %s4
  $region1: #{tpu_custom_call.1} parent=0
    #allocation2 [shape = 'u8[4096]{0}', space=vmem, size = 0x1000, scoped, tag = 'input window, operand 0, single buffered']
    #allocation3 [shape = 's32[1]{0}', space=sflag, size = 0x4, scoped, tag = 'scoped memory for tpu_custom_call.1']
    #allocation4 [shape = 's32[1]{0}', space=sflag, size = 0x4, scoped, tag = 'scoped memory for tpu_custom_call.1']
    #allocation5 [shape = 'u8[65536]{0}', space=vmem, size = 0x10000, scoped, tag = 'input window, operand 1, single buffered']
    #allocation6 [shape = 's32[1]{0}', space=sflag, size = 0x4, scoped, tag = 'scoped memory for tpu_custom_call.1']
    #allocation7 [shape = 'u8[4096]{0}', space=vmem, size = 0x1000, scoped, tag = 'output window, operand 0, single buffered']
    %8 = vsyncpa [#allocation3], 0
    %9 = vsyncpa [#allocation6], 0
    %10 = vsyncpa [#allocation4], 0
    // Predicated region
    $region2: #{tpu_custom_call.1} parent=1 // pred_check
      _
    $region3: #{tpu_custom_call.1} parent=1 // pred_check_branch
      %12 = sbr.rel (0) target = $region5
    $region4: #{tpu_custom_call.1} parent=1 // pred_region
      %s14 = ssub.s32 128, 128
      %15 = vsyncadd [#allocation3], %s14
      %s17 = sshll.u32 [#allocation2], 4
      %s18 = int_to_ptr.vmem [resolvable:$true] %s17
      %20 = dma.hbm_to_vmem [thread:$0]  %s0, 128, %s18, [#allocation3]
    $region5: #{tpu_custom_call.1} parent=1 // pred_fallthru
      _
    // Predicated region
    $region6: #{tpu_custom_call.1} parent=1 // pred_check
      _
    $region7: #{tpu_custom_call.1} parent=1 // pred_check_branch
      %22 = sbr.rel (0) target = $region9
    $region8: #{tpu_custom_call.1} parent=1 // pred_region
      %s24 = ssub.s32 2048, 2048
      %25 = vsyncadd [#allocation6], %s24
      %s26 = sshll.u32 [#allocation5], 4
      %s27 = int_to_ptr.vmem [resolvable:$true] %s26
      %32 = dma.hbm_to_vmem [thread:$0]  %s1, 2048, %s27, [#allocation6], 128, 128, 8
    $region9: #{tpu_custom_call.1} parent=1 // pred_fallthru
      _
    // Predicated region
    $region10: #{tpu_custom_call.1} parent=1 // pred_check
      _
    $region11: #{tpu_custom_call.1} parent=1 // pred_check_branch
      %34 = sbr.rel (0) target = $region13
    $region12: #{tpu_custom_call.1} parent=1 // pred_region
      _
    $region13: #{tpu_custom_call.1} parent=1 // pred_fallthru
      _
    // Predicated region
    $region14: #{tpu_custom_call.1} parent=1 // pred_check
      _
    $region15: #{tpu_custom_call.1} parent=1 // pred_check_branch
      %36 = sbr.rel (0) target = $region17
    $region16: #{tpu_custom_call.1} parent=1 // pred_region
      %37 = dma.done [#allocation3], 128
    $region17: #{tpu_custom_call.1} parent=1 // pred_fallthru
      _
    // Predicated region
    $region18: #{tpu_custom_call.1} parent=1 // pred_check
      _
    $region19: #{tpu_custom_call.1} parent=1 // pred_check_branch
      %39 = sbr.rel (0) target = $region21
    $region20: #{tpu_custom_call.1} parent=1 // pred_region
      %40 = dma.done [#allocation6], 2048
    $region21: #{tpu_custom_call.1} parent=1 // pred_fallthru
      _
    %v41 = vld [vmem:[#allocation2] sm:$0xff]
    %v42 = vld [vmem:[#allocation5] sm:$0xff]
    %v43 = vld [vmem:[#allocation5 + $0x8] sm:$0xff]
    %v44 = vld [vmem:[#allocation5 + $0x10] sm:$0xff]
    %v45 = vld [vmem:[#allocation5 + $0x18] sm:$0xff]
    %v46 = vld [vmem:[#allocation5 + $0x20] sm:$0xff]
    %v47 = vld [vmem:[#allocation5 + $0x28] sm:$0xff]
    %v48 = vld [vmem:[#allocation5 + $0x30] sm:$0xff]
    %v49 = vld [vmem:[#allocation5 + $0x38] sm:$0xff]
    %v50 = vld [vmem:[#allocation5 + $0x40] sm:$0xff]
    %v51 = vld [vmem:[#allocation5 + $0x48] sm:$0xff]
    %v52 = vld [vmem:[#allocation5 + $0x50] sm:$0xff]
    %v53 = vld [vmem:[#allocation5 + $0x58] sm:$0xff]
    %v54 = vld [vmem:[#allocation5 + $0x60] sm:$0xff]
    %v55 = vld [vmem:[#allocation5 + $0x68] sm:$0xff]
    %v56 = vld [vmem:[#allocation5 + $0x70] sm:$0xff]
    %v57 = vld [vmem:[#allocation5 + $0x78] sm:$0xff]
    %v58 = vld [vmem:[%s2] sm:$0x1]
    %v60 = vlaneseq
    %v61 = vshrl.u32 %v60, 7
    %v62 = vsub.s32 0, %v61
    %v63 = vrot.slane %v58, %v62
    %65 = vmatprep.subr.mxu0 0.0
    %66 = vmatpush1.msra.mxu0 %v57
    %67 = vmatprep.subr.mxu0 0.0
    %68 = vmatpush1.msra.mxu0 %v56
    %69 = vmatprep.subr.mxu0 0.0
    %70 = vmatpush1.msra.mxu0 %v55
    %71 = vmatprep.subr.mxu0 0.0
    %72 = vmatpush1.msra.mxu0 %v54
    %73 = vmatprep.subr.mxu0 0.0
    %74 = vmatpush1.msra.mxu0 %v53
    %75 = vmatprep.subr.mxu0 0.0
    %76 = vmatpush1.msra.mxu0 %v52
    %77 = vmatprep.subr.mxu0 0.0
    %78 = vmatpush1.msra.mxu0 %v51
    %79 = vmatprep.subr.mxu0 0.0
    %80 = vmatpush1.msra.mxu0 %v50
    %81 = vmatprep.subr.mxu0 0.0
    %82 = vmatpush1.msra.mxu0 %v49
    %83 = vmatprep.subr.mxu0 0.0
    %84 = vmatpush1.msra.mxu0 %v48
    %85 = vmatprep.subr.mxu0 0.0
    %86 = vmatpush1.msra.mxu0 %v47
    %87 = vmatprep.subr.mxu0 0.0
    %88 = vmatpush1.msra.mxu0 %v46
    %89 = vmatprep.subr.mxu0 0.0
    %90 = vmatpush1.msra.mxu0 %v45
    %91 = vmatprep.subr.mxu0 0.0
    %92 = vmatpush1.msra.mxu0 %v44
    %93 = vmatprep.subr.mxu0 0.0
    %94 = vmatpush1.msra.mxu0 %v43
    %95 = vmatprep.subr.mxu0 0.0
    %96 = vmatpush1.msra.mxu0 %v42
    %97 = vmatprep.subr.mxu0 0.0
    %98 = vmatpush2.msra.mxu0 0.0
    %99 = vmatprep.subr.mxu0 0.0
    %100 = vmatpush2.msra.mxu0 0.0
    %101 = vmatprep.subr.mxu0 0.0
    %102 = vmatpush2.msra.mxu0 0.0
    %103 = vmatprep.subr.mxu0 0.0
    %104 = vmatpush2.msra.mxu0 0.0
    %105 = vmatprep.subr.mxu0 0.0
    %106 = vmatpush2.msra.mxu0 0.0
    %107 = vmatprep.subr.mxu0 0.0
    %108 = vmatpush2.msra.mxu0 0.0
    %109 = vmatprep.subr.mxu0 0.0
    %110 = vmatpush2.msra.mxu0 0.0
    %111 = vmatprep.subr.mxu0 0.0
    %112 = vmatpush2.msra.mxu0 0.0
    %113 = vmatprep.subr.mxu0 0.0
    %114 = vmatpush2.msra.mxu0 0.0
    %115 = vmatprep.subr.mxu0 0.0
    %116 = vmatpush2.msra.mxu0 0.0
    %117 = vmatprep.subr.mxu0 0.0
    %118 = vmatpush2.msra.mxu0 0.0
    %119 = vmatprep.subr.mxu0 0.0
    %120 = vmatpush2.msra.mxu0 0.0
    %121 = vmatprep.subr.mxu0 0.0
    %122 = vmatpush2.msra.mxu0 0.0
    %123 = vmatprep.subr.mxu0 0.0
    %124 = vmatpush2.msra.mxu0 0.0
    %125 = vmatprep.subr.mxu0 0.0
    %126 = vmatpush2.msra.mxu0 0.0
    %127 = vmatprep.subr.mxu0 0.0
    %128 = vmatpush2.msra.mxu0 0.0
    %129 = vmatprep.mubr.f32.mxu0 0.0
    %130 = vmatmul.mubr.f32.gmra.mxu0 %v41
    %v131 = vpop.f32.mrf.mxu0
    %v132 = vadd.f32 %v63, %v131
    %v133 = vpop.f32.mrf.mxu0
    %134 = vdwg.mxu0
    %v135 = vmax.f32 %v132, 0.0
    %136 = vst [vmem:[#allocation7] sm:$0xff] %v135
    // Predicated region
    $region22: #{tpu_custom_call.1} parent=1 // pred_check
      _
    $region23: #{tpu_custom_call.1} parent=1 // pred_check_branch
      %138 = sbr.rel (0) target = $region25
    $region24: #{tpu_custom_call.1} parent=1 // pred_region
      %s140 = ssub.s32 128, 128
      %141 = vsyncadd [#allocation4], %s140
      %s143 = sshll.u32 [#allocation7], 4
      %s144 = int_to_ptr.vmem [resolvable:$true] %s143
      %146 = dma.vmem_to_hbm [thread:$0]  %s144, 128, %s3, [#allocation4]
    $region25: #{tpu_custom_call.1} parent=1 // pred_fallthru
      _
    // Predicated region
    $region26: #{tpu_custom_call.1} parent=1 // pred_check
      _
    $region27: #{tpu_custom_call.1} parent=1 // pred_check_branch
      %148 = sbr.rel (0) target = $region29
    $region28: #{tpu_custom_call.1} parent=1 // pred_region
      %149 = dma.done [#allocation4], 128
    $region29: #{tpu_custom_call.1} parent=1 // pred_fallthru
      _
    %150 = vsyncpa [#allocation3], 1
    %151 = vsyncpa [#allocation6], 1
    %152 = vsyncpa [#allocation4], 1

</llo_original>
